<compile_context>
chip_gen: v7x
topology: tpu7x:2x2x1
jax: 0.10.0
libtpu: 0.0.40
codegen_flags: <defaults>
</compile_context>

<pallas_src>
import functools

import jax
import jax.numpy as jnp
from jax import lax
from jax.experimental import pallas as pl
from jax.experimental.pallas import tpu as pltpu


def _round_up(n: int, m: int) -> int:
    return (n + m - 1) // m * m


def _doc_tower_kernel(x_ref, wih_t_ref, whh_t_ref, bias_ref, wfc_hbm_ref,
                      bfc_ref, out_ref, h_scratch, z_scratch, wfc_vmem, fc_sem,
                      *, time_chunk, front_pad):
    """Grid = (batch_tile b, time_chunk c); one call runs `time_chunk` RNN steps.

    x_ref       : (tc, bt, E)   raw input chunk (time-major), matmul_dtype
    wih_t_ref   : (E, ep)       W_ih^T (output-padded), resident, Buffered(1)
    whh_t_ref   : (ep, ep)      W_hh^T, resident, Buffered(1)
    bias_ref    : (1, ep)       b_ih + b_hh (f32), resident
    wfc_hbm_ref : (ep, ep)      W_fc^T, left in HBM (pl.ANY)
    bfc_ref     : (1, ep)       fc bias (f32), resident
    out_ref     : (bt, ep)      written only on the last time chunk
    h_scratch   : (bt, ep) f32  hidden-state carry across time chunks
    z_scratch   : (tc, bt, ep)  f32 chunk projection buffer
    wfc_vmem    : (ep, ep)      landing buffer for the W_fc^T DMA
    fc_sem      : DMA semaphore for that copy
    """
    c = pl.program_id(1)
    last = pl.num_programs(1) - 1
    _, bt, e_in = x_ref.shape
    ep = whh_t_ref.shape[1]

    @pl.when(c == 0)
    def _():
        h_scratch[...] = jnp.zeros_like(h_scratch)
        # Issue the fc-weight copy as early as possible (per batch tile, so it
        # stays correct when the batch axis is split across TensorCores); it is
        # only waited on / consumed in the last time chunk.
        pltpu.make_async_copy(wfc_hbm_ref, wfc_vmem, fc_sem).start()

    # ---- fused input projection for this chunk: ONE MXU matmul --------------
    # z[t, b, :] = x[t, b, :] @ W_ih^T + (b_ih + b_hh)
    x_chunk = x_ref[...].reshape(time_chunk * bt, e_in)
    proj = jnp.dot(x_chunk, wih_t_ref[...], preferred_element_type=jnp.float32)
    z_scratch[...] = proj.reshape(time_chunk, bt, ep) + bias_ref[...][None]

    if front_pad:
        # Front-padded time steps (only in chunk 0) must contribute nothing:
        # zero their z rows so tanh(0 + 0 @ W_hh^T) keeps h at exactly 0.
        @pl.when(c == 0)
        def _():
            z_scratch[pl.ds(0, front_pad)] = jnp.zeros(
                (front_pad, bt, ep), z_scratch.dtype)

    # ---- serial recurrence (latency-bound h -> h chain) ----------------------
    w_hh_t = whh_t_ref[...]

    def step(t, h):
        return jnp.tanh(
            z_scratch[t]
            + jnp.dot(h.astype(w_hh_t.dtype), w_hh_t,
                      preferred_element_type=jnp.float32))

    h = lax.fori_loop(0, time_chunk, step, h_scratch[...], unroll=True)
    h_scratch[...] = h

    @pl.when(c == last)
    def _():
        pltpu.make_async_copy(wfc_hbm_ref, wfc_vmem, fc_sem).wait()
        out_ref[...] = (
            jnp.dot(h.astype(wfc_vmem.dtype), wfc_vmem[...],
                    preferred_element_type=jnp.float32)
            + bfc_ref[...]
        ).astype(out_ref.dtype)


def doc_tower_forward(x, params, *, time_chunk=16, batch_tile=64,
                      matmul_dtype=jnp.float32):
    """x: (B, T, E) float32 (PyTorch batch_first layout). Returns (B, E) f32."""
    w_ih, w_hh, b_ih, b_hh, w_fc, b_fc = params
    B, T, E = x.shape
    f32 = jnp.float32
    itemsize = jnp.dtype(matmul_dtype).itemsize

    # TPU-native padding: lanes (E) to 128; batch sublanes to 8 (f32) / 16 (bf16).
    sub = 8 * (4 // itemsize)
    ep = _round_up(E, 128)
    bt = _round_up(min(batch_tile, B), sub)       # per-core batch tile
    bp = _round_up(B, bt)
    n_btiles = bp // bt
    tc = min(time_chunk, T)
    tp = _round_up(T, tc)
    n_chunks = tp // tc
    front_pad = tp - T                            # zero steps prepended to time

    # Time-major x, padded batch rows and leading time steps with zeros.
    # (Padding x, not z: the z HBM round trip is gone entirely.)
    x_tm = jnp.transpose(x, (1, 0, 2)).astype(matmul_dtype)          # (T, B, E)
    x_tm = jnp.pad(x_tm, ((front_pad, 0), (0, bp - B), (0, 0)))

    # Pre-transposed, padded weights (no per-step transpose in the kernel).
    # Zero pad rows/cols keep padded hidden columns exactly 0 through tanh.
    w_ih_t = jnp.pad(w_ih.T.astype(matmul_dtype), ((0, 0), (0, ep - E)))
    w_hh_t = jnp.pad(w_hh.T.astype(matmul_dtype), ((0, ep - E), (0, ep - E)))
    w_fc_t = jnp.pad(w_fc.T.astype(matmul_dtype), ((0, ep - E), (0, ep - E)))
    bias = jnp.pad((b_ih + b_hh).astype(f32), (0, ep - E)).reshape(1, ep)
    b_fc_p = jnp.pad(b_fc.astype(f32), (0, ep - E)).reshape(1, ep)

    # VMEM budget (double-buffered x + out, single-buffered resident weights,
    # scratch).  Capped at 64 MiB so it is also valid on v7x.
    vmem_est = (
        2 * tc * bt * E * itemsize          # x chunk double buffer
        + E * ep * itemsize                 # W_ih^T (Buffered(1))
        + ep * ep * itemsize                # W_hh^T (Buffered(1))
        + 2 * ep * 4                        # biases
        + 2 * bt * ep * 4                   # out double buffer
        + bt * ep * 4                       # h carry
        + tc * bt * ep * 4                  # z scratch
        + ep * ep * itemsize                # W_fc^T landing buffer
    )
    vmem_limit = int(min(max(2 * vmem_est, 32 * 1024 * 1024), 64 * 1024 * 1024))

    kernel = functools.partial(_doc_tower_kernel, time_chunk=tc,
                               front_pad=front_pad)
    resident = pl.Buffered(1)   # constant index_map -> no redundant 2nd buffer

    out_padded = pl.pallas_call(
        kernel,
        out_shape=jax.ShapeDtypeStruct((bp, ep), f32),
        grid_spec=pltpu.PrefetchScalarGridSpec(
            num_scalar_prefetch=0,
            grid=(n_btiles, n_chunks),
            in_specs=[
                pl.BlockSpec((tc, bt, E), lambda b, c: (c, b, 0)),   # x chunk
                pl.BlockSpec((E, ep), lambda b, c: (0, 0),
                             pipeline_mode=resident),                 # W_ih^T
                pl.BlockSpec((ep, ep), lambda b, c: (0, 0),
                             pipeline_mode=resident),                 # W_hh^T
                pl.BlockSpec((1, ep), lambda b, c: (0, 0),
                             pipeline_mode=resident),                 # b_ih+b_hh
                pl.BlockSpec(memory_space=pl.ANY),                    # W_fc^T HBM
                pl.BlockSpec((1, ep), lambda b, c: (0, 0),
                             pipeline_mode=resident),                 # b_fc
            ],
            out_specs=pl.BlockSpec((bt, ep), lambda b, c: (b, 0)),
            scratch_shapes=[
                pltpu.VMEM((bt, ep), f32),            # hidden-state carry
                pltpu.VMEM((tc, bt, ep), f32),        # per-chunk z buffer
                pltpu.VMEM((ep, ep), matmul_dtype),   # W_fc^T landing buffer
                pltpu.SemaphoreType.DMA(()),          # its DMA semaphore
            ],
        ),
        compiler_params=pltpu.CompilerParams(
            # Batch tiles are independent -> "parallel" (second TensorCore on
            # v7x); time chunks carry h -> "arbitrary".
            dimension_semantics=("parallel", "arbitrary"),
            vmem_limit_bytes=vmem_limit,
        ),
    )(x_tm, w_ih_t, w_hh_t, bias, w_fc_t, b_fc_p)

    return out_padded[:B, :E]


def init_params(key, embed_dim):
    """Deterministic init mirroring PyTorch's uniform(-1/sqrt(E), 1/sqrt(E))."""
    k = 1.0 / jnp.sqrt(jnp.float32(embed_dim))
    keys = jax.random.split(key, 6)
    shapes = [
        (embed_dim, embed_dim),  # W_ih
        (embed_dim, embed_dim),  # W_hh
        (embed_dim,),            # b_ih
        (embed_dim,),            # b_hh
        (embed_dim, embed_dim),  # W_fc
        (embed_dim,),            # b_fc
    ]
    return tuple(
        jax.random.uniform(kk, s, jnp.float32, minval=-k, maxval=k)
        for kk, s in zip(keys, shapes)
    )


def reference_forward(x, params):
    """Pure-JAX reference of the PyTorch forward (for sanity checking)."""
    w_ih, w_hh, b_ih, b_hh, w_fc, b_fc = params
    B, T, E = x.shape
    h = jnp.zeros((B, E), jnp.float32)
    for t in range(T):
        h = jnp.tanh(x[:, t, :] @ w_ih.T + b_ih + h @ w_hh.T + b_hh)
    return h @ w_fc.T + b_fc


if __name__ == "__main__":
    B, T, E = 2, 8, 32
    key = jax.random.PRNGKey(0)
    kx, kp = jax.random.split(key)

    x = jax.random.normal(kx, (B, T, E), dtype=jnp.float32)
    params = init_params(kp, E)

    fwd = jax.jit(doc_tower_forward)
    out = fwd(x, params)
    jax.block_until_ready(out)

    ref = reference_forward(x, params)
    assert out.shape == (B, E)
    assert jnp.allclose(out, ref, atol=2e-4, rtol=2e-4), "mismatch vs reference"

    print("KERNEL_OK")
</pallas_src>

<mosaic_0001>
module attributes {stable_mosaic.version = 11 : i64} {
  func.func @_doc_tower_kernel(%arg0: i32, %arg1: i32, %arg2: memref<8x8x32xf32, #tpu.memory_space<vmem>>, %arg3: memref<32x128xf32, #tpu.memory_space<vmem>>, %arg4: memref<128x128xf32, #tpu.memory_space<vmem>>, %arg5: memref<1x128xf32, #tpu.memory_space<vmem>>, %arg6: memref<128x128xf32, #tpu.memory_space<any>>, %arg7: memref<1x128xf32, #tpu.memory_space<vmem>>, %arg8: memref<8x128xf32, #tpu.memory_space<vmem>>, %arg9: memref<8x128xf32, #tpu.memory_space<vmem>>, %arg10: memref<8x8x128xf32, #tpu.memory_space<vmem>>, %arg11: memref<128x128xf32, #tpu.memory_space<vmem>>, %arg12: memref<!tpu.dma_semaphore, #tpu.memory_space<semaphore_mem>>) attributes {dimension_semantics = [#tpu.dimension_semantics<parallel>, #tpu.dimension_semantics<arbitrary>], iteration_bounds = array<i64: 1, 1>, scalar_prefetch = 0 : i64, scratch_operands = 4 : i64, tpu.core_type = #tpu.core_type<tc>, window_params = [{transform_indices = @transform_0, window_bounds = array<i64: 8, 8, 32>}, {pipeline_mode = #tpu.pipeline_mode<synchronous>, transform_indices = @transform_1, window_bounds = array<i64: 32, 128>}, {pipeline_mode = #tpu.pipeline_mode<synchronous>, transform_indices = @transform_2, window_bounds = array<i64: 128, 128>}, {pipeline_mode = #tpu.pipeline_mode<synchronous>, transform_indices = @transform_3, window_bounds = array<i64: 1, 128>}, {}, {pipeline_mode = #tpu.pipeline_mode<synchronous>, transform_indices = @transform_5, window_bounds = array<i64: 1, 128>}, {transform_indices = @transform_6, window_bounds = array<i64: 8, 128>}]} {
    %c0_i32 = arith.constant 0 : i32
    %0 = arith.cmpi eq, %arg1, %c0_i32 : i32
    %1 = arith.extui %0 : i1 to i32
    %c0_i32_0 = arith.constant 0 : i32
    %2 = arith.cmpi ne, %1, %c0_i32_0 : i32
    scf.if %2 {
      %cst_43 = arith.constant 0.000000e+00 : f32
      %67 = vector.broadcast %cst_43 : f32 to vector<8x128xf32>
      %c0_44 = arith.constant 0 : index
      %c0_45 = arith.constant 0 : index
      %68 = vector.load %arg9[%c0_44, %c0_45] : memref<8x128xf32, #tpu.memory_space<vmem>>, vector<8x128xf32>
      tpu.vector_store %arg9[%c0_44, %c0_45], %67 {strides = array<i32>} : memref<8x128xf32, #tpu.memory_space<vmem>>, vector<8x128xf32>,
      tpu.enqueue_dma source(%arg6 : memref<128x128xf32, #tpu.memory_space<any>>) target(%arg11 : memref<128x128xf32, #tpu.memory_space<vmem>>) target_semaphore(%arg12 : memref<!tpu.dma_semaphore, #tpu.memory_space<semaphore_mem>>)
    } else {
    }
    %c0 = arith.constant 0 : index
    %c0_1 = arith.constant 0 : index
    %c0_2 = arith.constant 0 : index
    %3 = vector.load %arg2[%c0, %c0_1, %c0_2] : memref<8x8x32xf32, #tpu.memory_space<vmem>>, vector<8x8x32xf32>
    %4 = vector.shape_cast %3 : vector<8x8x32xf32> to vector<64x32xf32>
    %c0_3 = arith.constant 0 : index
    %c0_4 = arith.constant 0 : index
    %5 = vector.load %arg3[%c0_3, %c0_4] : memref<32x128xf32, #tpu.memory_space<vmem>>, vector<32x128xf32>
    %cst = arith.constant dense<0.000000e+00> : vector<64x128xf32>
    %6 = tpu.matmul %4, %5, %cst {dimension_numbers = #tpu.dot_dimension_numbers<[1], [0], [0], [1], [0, 0, 1, 1], [], []>} : vector<64x32xf32>, vector<32x128xf32>, vector<64x128xf32> -> vector<64x128xf32>
    %7 = vector.shape_cast %6 : vector<64x128xf32> to vector<8x8x128xf32>
    %c0_5 = arith.constant 0 : index
    %c0_6 = arith.constant 0 : index
    %8 = vector.load %arg5[%c0_5, %c0_6] : memref<1x128xf32, #tpu.memory_space<vmem>>, vector<1x128xf32>
    %9 = vector.shape_cast %8 : vector<1x128xf32> to vector<1x1x128xf32>
    %10 = vector.broadcast %9 : vector<1x1x128xf32> to vector<8x8x128xf32>
    %11 = arith.addf %7, %10 : vector<8x8x128xf32>
    %c0_7 = arith.constant 0 : index
    %c0_8 = arith.constant 0 : index
    %c0_9 = arith.constant 0 : index
    %12 = vector.load %arg10[%c0_7, %c0_8, %c0_9] : memref<8x8x128xf32, #tpu.memory_space<vmem>>, vector<8x8x128xf32>
    tpu.vector_store %arg10[%c0_7, %c0_8, %c0_9], %11 {strides = array<i32>} : memref<8x8x128xf32, #tpu.memory_space<vmem>>, vector<8x8x128xf32>,
    %c0_10 = arith.constant 0 : index
    %c0_11 = arith.constant 0 : index
    %13 = vector.load %arg4[%c0_10, %c0_11] : memref<128x128xf32, #tpu.memory_space<vmem>>, vector<128x128xf32>
    %c0_12 = arith.constant 0 : index
    %c0_13 = arith.constant 0 : index
    %14 = vector.load %arg9[%c0_12, %c0_13] : memref<8x128xf32, #tpu.memory_space<vmem>>, vector<8x128xf32>
    %c0_i32_14 = arith.constant 0 : i32
    %15 = arith.index_cast %c0_i32_14 : i32 to index
    %c0_15 = arith.constant 0 : index
    %c0_16 = arith.constant 0 : index
    %16 = vector.load %arg10[%15, %c0_15, %c0_16] : memref<8x8x128xf32, #tpu.memory_space<vmem>>, vector<1x8x128xf32>
    %17 = vector.shape_cast %16 : vector<1x8x128xf32> to vector<8x128xf32>
    %cst_17 = arith.constant dense<0.000000e+00> : vector<8x128xf32>
    %18 = tpu.matmul %14, %13, %cst_17 {dimension_numbers = #tpu.dot_dimension_numbers<[1], [0], [0], [1], [0, 0, 1, 1], [], []>} : vector<8x128xf32>, vector<128x128xf32>, vector<8x128xf32> -> vector<8x128xf32>
    %19 = arith.addf %17, %18 : vector<8x128xf32>
    %20 = math.tanh %19 : vector<8x128xf32>
    %c1_i32 = arith.constant 1 : i32
    %21 = arith.index_cast %c1_i32 : i32 to index
    %c0_18 = arith.constant 0 : index
    %c0_19 = arith.constant 0 : index
    %22 = vector.load %arg10[%21, %c0_18, %c0_19] : memref<8x8x128xf32, #tpu.memory_space<vmem>>, vector<1x8x128xf32>
    %23 = vector.shape_cast %22 : vector<1x8x128xf32> to vector<8x128xf32>
    %cst_20 = arith.constant dense<0.000000e+00> : vector<8x128xf32>
    %24 = tpu.matmul %20, %13, %cst_20 {dimension_numbers = #tpu.dot_dimension_numbers<[1], [0], [0], [1], [0, 0, 1, 1], [], []>} : vector<8x128xf32>, vector<128x128xf32>, vector<8x128xf32> -> vector<8x128xf32>
    %25 = arith.addf %23, %24 : vector<8x128xf32>
    %26 = math.tanh %25 : vector<8x128xf32>
    %c2_i32 = arith.constant 2 : i32
    %27 = arith.index_cast %c2_i32 : i32 to index
    %c0_21 = arith.constant 0 : index
    %c0_22 = arith.constant 0 : index
    %28 = vector.load %arg10[%27, %c0_21, %c0_22] : memref<8x8x128xf32, #tpu.memory_space<vmem>>, vector<1x8x128xf32>
    %29 = vector.shape_cast %28 : vector<1x8x128xf32> to vector<8x128xf32>
    %cst_23 = arith.constant dense<0.000000e+00> : vector<8x128xf32>
    %30 = tpu.matmul %26, %13, %cst_23 {dimension_numbers = #tpu.dot_dimension_numbers<[1], [0], [0], [1], [0, 0, 1, 1], [], []>} : vector<8x128xf32>, vector<128x128xf32>, vector<8x128xf32> -> vector<8x128xf32>
    %31 = arith.addf %29, %30 : vector<8x128xf32>
    %32 = math.tanh %31 : vector<8x128xf32>
    %c3_i32 = arith.constant 3 : i32
    %33 = arith.index_cast %c3_i32 : i32 to index
    %c0_24 = arith.constant 0 : index
    %c0_25 = arith.constant 0 : index
    %34 = vector.load %arg10[%33, %c0_24, %c0_25] : memref<8x8x128xf32, #tpu.memory_space<vmem>>, vector<1x8x128xf32>
    %35 = vector.shape_cast %34 : vector<1x8x128xf32> to vector<8x128xf32>
    %cst_26 = arith.constant dense<0.000000e+00> : vector<8x128xf32>
    %36 = tpu.matmul %32, %13, %cst_26 {dimension_numbers = #tpu.dot_dimension_numbers<[1], [0], [0], [1], [0, 0, 1, 1], [], []>} : vector<8x128xf32>, vector<128x128xf32>, vector<8x128xf32> -> vector<8x128xf32>
    %37 = arith.addf %35, %36 : vector<8x128xf32>
    %38 = math.tanh %37 : vector<8x128xf32>
    %c4_i32 = arith.constant 4 : i32
    %39 = arith.index_cast %c4_i32 : i32 to index
    %c0_27 = arith.constant 0 : index
    %c0_28 = arith.constant 0 : index
    %40 = vector.load %arg10[%39, %c0_27, %c0_28] : memref<8x8x128xf32, #tpu.memory_space<vmem>>, vector<1x8x128xf32>
    %41 = vector.shape_cast %40 : vector<1x8x128xf32> to vector<8x128xf32>
    %cst_29 = arith.constant dense<0.000000e+00> : vector<8x128xf32>
    %42 = tpu.matmul %38, %13, %cst_29 {dimension_numbers = #tpu.dot_dimension_numbers<[1], [0], [0], [1], [0, 0, 1, 1], [], []>} : vector<8x128xf32>, vector<128x128xf32>, vector<8x128xf32> -> vector<8x128xf32>
    %43 = arith.addf %41, %42 : vector<8x128xf32>
    %44 = math.tanh %43 : vector<8x128xf32>
    %c5_i32 = arith.constant 5 : i32
    %45 = arith.index_cast %c5_i32 : i32 to index
    %c0_30 = arith.constant 0 : index
    %c0_31 = arith.constant 0 : index
    %46 = vector.load %arg10[%45, %c0_30, %c0_31] : memref<8x8x128xf32, #tpu.memory_space<vmem>>, vector<1x8x128xf32>
    %47 = vector.shape_cast %46 : vector<1x8x128xf32> to vector<8x128xf32>
    %cst_32 = arith.constant dense<0.000000e+00> : vector<8x128xf32>
    %48 = tpu.matmul %44, %13, %cst_32 {dimension_numbers = #tpu.dot_dimension_numbers<[1], [0], [0], [1], [0, 0, 1, 1], [], []>} : vector<8x128xf32>, vector<128x128xf32>, vector<8x128xf32> -> vector<8x128xf32>
    %49 = arith.addf %47, %48 : vector<8x128xf32>
    %50 = math.tanh %49 : vector<8x128xf32>
    %c6_i32 = arith.constant 6 : i32
    %51 = arith.index_cast %c6_i32 : i32 to index
    %c0_33 = arith.constant 0 : index
    %c0_34 = arith.constant 0 : index
    %52 = vector.load %arg10[%51, %c0_33, %c0_34] : memref<8x8x128xf32, #tpu.memory_space<vmem>>, vector<1x8x128xf32>
    %53 = vector.shape_cast %52 : vector<1x8x128xf32> to vector<8x128xf32>
    %cst_35 = arith.constant dense<0.000000e+00> : vector<8x128xf32>
    %54 = tpu.matmul %50, %13, %cst_35 {dimension_numbers = #tpu.dot_dimension_numbers<[1], [0], [0], [1], [0, 0, 1, 1], [], []>} : vector<8x128xf32>, vector<128x128xf32>, vector<8x128xf32> -> vector<8x128xf32>
    %55 = arith.addf %53, %54 : vector<8x128xf32>
    %56 = math.tanh %55 : vector<8x128xf32>
    %c7_i32 = arith.constant 7 : i32
    %57 = arith.index_cast %c7_i32 : i32 to index
    %c0_36 = arith.constant 0 : index
    %c0_37 = arith.constant 0 : index
    %58 = vector.load %arg10[%57, %c0_36, %c0_37] : memref<8x8x128xf32, #tpu.memory_space<vmem>>, vector<1x8x128xf32>
    %59 = vector.shape_cast %58 : vector<1x8x128xf32> to vector<8x128xf32>
    %cst_38 = arith.constant dense<0.000000e+00> : vector<8x128xf32>
    %60 = tpu.matmul %56, %13, %cst_38 {dimension_numbers = #tpu.dot_dimension_numbers<[1], [0], [0], [1], [0, 0, 1, 1], [], []>} : vector<8x128xf32>, vector<128x128xf32>, vector<8x128xf32> -> vector<8x128xf32>
    %61 = arith.addf %59, %60 : vector<8x128xf32>
    %62 = math.tanh %61 : vector<8x128xf32>
    %c8_i32 = arith.constant 8 : i32
    %c0_39 = arith.constant 0 : index
    %c0_40 = arith.constant 0 : index
    %63 = vector.load %arg9[%c0_39, %c0_40] : memref<8x128xf32, #tpu.memory_space<vmem>>, vector<8x128xf32>
    tpu.vector_store %arg9[%c0_39, %c0_40], %62 {strides = array<i32>} : memref<8x128xf32, #tpu.memory_space<vmem>>, vector<8x128xf32>,
    %c0_i32_41 = arith.constant 0 : i32
    %64 = arith.cmpi eq, %arg1, %c0_i32_41 : i32
    %65 = arith.extui %64 : i1 to i32
    %c0_i32_42 = arith.constant 0 : i32
    %66 = arith.cmpi ne, %65, %c0_i32_42 : i32
    scf.if %66 {
      tpu.wait_dma2 semaphore(%arg12 : memref<!tpu.dma_semaphore, #tpu.memory_space<semaphore_mem>>) src(%arg6 : memref<128x128xf32, #tpu.memory_space<any>>) dst(%arg11 : memref<128x128xf32, #tpu.memory_space<vmem>>)
      %c0_43 = arith.constant 0 : index
      %c0_44 = arith.constant 0 : index
      %67 = vector.load %arg11[%c0_43, %c0_44] : memref<128x128xf32, #tpu.memory_space<vmem>>, vector<128x128xf32>
      %cst_45 = arith.constant dense<0.000000e+00> : vector<8x128xf32>
      %68 = tpu.matmul %62, %67, %cst_45 {dimension_numbers = #tpu.dot_dimension_numbers<[1], [0], [0], [1], [0, 0, 1, 1], [], []>} : vector<8x128xf32>, vector<128x128xf32>, vector<8x128xf32> -> vector<8x128xf32>
      %c0_46 = arith.constant 0 : index
      %c0_47 = arith.constant 0 : index
      %69 = vector.load %arg7[%c0_46, %c0_47] : memref<1x128xf32, #tpu.memory_space<vmem>>, vector<1x128xf32>
      %70 = vector.broadcast %69 : vector<1x128xf32> to vector<8x128xf32>
      %71 = arith.addf %68, %70 : vector<8x128xf32>
      %c0_48 = arith.constant 0 : index
      %c0_49 = arith.constant 0 : index
      %72 = vector.load %arg8[%c0_48, %c0_49] : memref<8x128xf32, #tpu.memory_space<vmem>>, vector<8x128xf32>
      tpu.vector_store %arg8[%c0_48, %c0_49], %71 {strides = array<i32>} : memref<8x128xf32, #tpu.memory_space<vmem>>, vector<8x128xf32>,
    } else {
    }
    return
  }
  func.func @transform_0(%arg0: i32, %arg1: i32) -> (i32, i32, i32) {
    %c0_i32 = arith.constant 0 : i32
    %c0_i32_0 = arith.constant 0 : i32
    return %arg1, %arg0, %c0_i32 : i32, i32, i32
  }
  func.func @transform_1(%arg0: i32, %arg1: i32) -> (i32, i32) {
    %c0_i32 = arith.constant 0 : i32
    %c0_i32_0 = arith.constant 0 : i32
    %c0_i32_1 = arith.constant 0 : i32
    return %c0_i32, %c0_i32_0 : i32, i32
  }
  func.func @transform_2(%arg0: i32, %arg1: i32) -> (i32, i32) {
    %c0_i32 = arith.constant 0 : i32
    %c0_i32_0 = arith.constant 0 : i32
    %c0_i32_1 = arith.constant 0 : i32
    return %c0_i32, %c0_i32_0 : i32, i32
  }
  func.func @transform_3(%arg0: i32, %arg1: i32) -> (i32, i32) {
    %c0_i32 = arith.constant 0 : i32
    %c0_i32_0 = arith.constant 0 : i32
    %c0_i32_1 = arith.constant 0 : i32
    return %c0_i32, %c0_i32_0 : i32, i32
  }
  func.func @transform_5(%arg0: i32, %arg1: i32) -> (i32, i32) {
    %c0_i32 = arith.constant 0 : i32
    %c0_i32_0 = arith.constant 0 : i32
    %c0_i32_1 = arith.constant 0 : i32
    return %c0_i32, %c0_i32_0 : i32, i32
  }
  func.func @transform_6(%arg0: i32, %arg1: i32) -> (i32, i32) {
    %c0_i32 = arith.constant 0 : i32
    %c0_i32_0 = arith.constant 0 : i32
    return %arg0, %c0_i32 : i32, i32
  }
}

</mosaic_0001>

<llo_original>
// kernel: doc_tower_forward.1
$region0: #{doc_tower_forward.1}
  #allocation0 [shape = 'u32[]', space=smem, size = 0x4, offset = 0x4, fixed_abs, tag = 'smem constant byte address 0x4 - core index']
  #allocation1 [shape = 'u32[144,128]{1,0:T(1,128)}', space=vmem, size = 0x12000, scoped, tag = 'internal scratch']
  #allocation2 [shape = 'f32[8,128]{1,0:T(8,128)}', space=vmem, size = 0x1000, scoped, tag = 'scratch operand']
  #allocation3 [shape = 'f32[8,8,128]{2,1,0:T(8,128)}', space=vmem, size = 0x8000, scoped, tag = 'scratch operand']
  #allocation4 [shape = 'f32[128,128]{1,0:T(8,128)}', space=vmem, size = 0x10000, scoped, tag = 'scratch operand']
  #allocation5 [shape = 's32[1]{0}', space=sflag, size = 0x4, scoped, tag = 'scratch operand']
  #allocation6 [shape = 's32[]', space=sflag, size = 0x4, offset = 0, fixed_abs, tag = 'sflag constant byte address 0x0 - dummy sync flag']
  %s0 = inlined_call_operand.vmem [shape: f32[8,8,32], index: 0, kind: input, shape index: {}]
  %s1 = inlined_call_operand.vmem [shape: f32[32,128], index: 1, kind: input, shape index: {}]
  %s2 = inlined_call_operand.vmem [shape: f32[128,128], index: 2, kind: input, shape index: {}]
  %s3 = inlined_call_operand.vmem [shape: f32[1,128], index: 3, kind: input, shape index: {}]
  %s4 = inlined_call_operand.vmem [shape: f32[128,128], index: 4, kind: input, shape index: {}]
  %s5 = inlined_call_operand.vmem [shape: f32[1,128], index: 5, kind: input, shape index: {}]
  %s6 = inlined_call_operand.vmem [shape: f32[8,128], index: 6, kind: output, shape index: {}]
  %s7 = sld [smem:[#allocation0]]
  $region72: #{doc_tower_forward.1} parent=0
    _
  %s9 = ssub.s32 1, %s7
  %s10 = scalar_select 0, %s9, %s7
  // Predicated region
  $region2: #{doc_tower_forward.1} parent=0 // pred_check
    _
  $region3: #{doc_tower_forward.1} parent=0 // pred_check_branch
    %12 = sbr.rel (0) target = $region5
  $region4: #{doc_tower_forward.1} parent=0 // pred_region
    _
  $region5: #{doc_tower_forward.1} parent=0 // pred_fallthru
    _
  // Predicated region
  $region6: #{doc_tower_forward.1} parent=0 // pred_check
    _
  $region7: #{doc_tower_forward.1} parent=0 // pred_check_branch
    %14 = sbr.rel (0) target = $region9
  $region8: #{doc_tower_forward.1} parent=0 // pred_region
    _
  $region9: #{doc_tower_forward.1} parent=0 // pred_fallthru
    _
  // Predicated region
  $region10: #{doc_tower_forward.1} parent=0 // pred_check
    _
  $region11: #{doc_tower_forward.1} parent=0 // pred_check_branch
    %16 = sbr.rel (0) target = $region13
  $region12: #{doc_tower_forward.1} parent=0 // pred_region
    _
  $region13: #{doc_tower_forward.1} parent=0 // pred_fallthru
    _
  // Predicated region
  $region14: #{doc_tower_forward.1} parent=0 // pred_check
    _
  $region15: #{doc_tower_forward.1} parent=0 // pred_check_branch
    %18 = sbr.rel (0) target = $region17
  $region16: #{doc_tower_forward.1} parent=0 // pred_region
    _
  $region17: #{doc_tower_forward.1} parent=0 // pred_fallthru
    _
  // Predicated region
  $region18: #{doc_tower_forward.1} parent=0 // pred_check
    _
  $region19: #{doc_tower_forward.1} parent=0 // pred_check_branch
    %20 = sbr.rel (0) target = $region21
  $region20: #{doc_tower_forward.1} parent=0 // pred_region
    _
  $region21: #{doc_tower_forward.1} parent=0 // pred_fallthru
    _
  %p21 = scmp.eq.s32.totalorder 0, 0
  // Predicated region
  $region22: #{doc_tower_forward.1} parent=0 // pred_check
    %p22 = pneg %p21
  $region23: #{doc_tower_forward.1} parent=0 // pred_check_branch
    %24 = sbr.rel (%p22) target = $region25
  $region24: #{doc_tower_forward.1} parent=0 // pred_region
    %25 = vst [vmem:[#allocation2] sm:$0xff] 0.0
    %p27 = scmp.lt.u32.totalorder 128, 8
    %p28 = pneg %p27
    // Predicated region
    $region26: #{doc_tower_forward.1} parent=24 // pred_check
      _
    $region27: #{doc_tower_forward.1} parent=24 // pred_check_branch
      %30 = sbr.rel (%p27) target = $region29
    $region28: #{doc_tower_forward.1} parent=24 // pred_region
      %s45 = sand.u32 128, 7
      %p46 = scmp.eq.s32.totalorder %s45, 0
      // Predicated region
      $region41: #{doc_tower_forward.1} parent=28 // pred_check
        %p47 = pneg %p46
      $region42: #{doc_tower_forward.1} parent=28 // pred_check_branch
        %49 = sbr.rel (%p47) target = $region44
      $region43: #{doc_tower_forward.1} parent=28 // pred_region
        loop: start=0, step=1, limit=1
        $region45: #{doc_tower_forward.1} parent=43 // loop_pre_header
          _
        $region46: #{doc_tower_forward.1} parent=43 // loop_header
          %s51 = sphi 0, %s55
          %p52 = scmp.ge.s32.totalorder %s51, 1
          %s56 = sphi %s4, %s4
          %s57 = sphi [#allocation4], [#allocation4]
        $region47: #{doc_tower_forward.1} parent=43 // loop_header_branch
          %54 = sbr.rel (%p52) target = $region51
        $region48: #{doc_tower_forward.1} parent=43 // loop_body
          %v58 = vld [vmem:[%s56] sm:$0xff]
          %59 = vst [vmem:[%s57] sm:$0xff] %v58
          %v60 = vld [vmem:[%s56 + $0x8] sm:$0xff]
          %61 = vst [vmem:[%s57 + $0x8] sm:$0xff] %v60
          %v62 = vld [vmem:[%s56 + $0x10] sm:$0xff]
          %63 = vst [vmem:[%s57 + $0x10] sm:$0xff] %v62
          %v64 = vld [vmem:[%s56 + $0x18] sm:$0xff]
          %65 = vst [vmem:[%s57 + $0x18] sm:$0xff] %v64
          %v66 = vld [vmem:[%s56 + $0x20] sm:$0xff]
          %67 = vst [vmem:[%s57 + $0x20] sm:$0xff] %v66
          %v68 = vld [vmem:[%s56 + $0x28] sm:$0xff]
          %69 = vst [vmem:[%s57 + $0x28] sm:$0xff] %v68
          %v70 = vld [vmem:[%s56 + $0x30] sm:$0xff]
          %71 = vst [vmem:[%s57 + $0x30] sm:$0xff] %v70
          %v72 = vld [vmem:[%s56 + $0x38] sm:$0xff]
          %73 = vst [vmem:[%s57 + $0x38] sm:$0xff] %v72
          %v74 = vld [vmem:[%s56 + $0x40] sm:$0xff]
          %75 = vst [vmem:[%s57 + $0x40] sm:$0xff] %v74
          %v76 = vld [vmem:[%s56 + $0x48] sm:$0xff]
          %77 = vst [vmem:[%s57 + $0x48] sm:$0xff] %v76
          %v78 = vld [vmem:[%s56 + $0x50] sm:$0xff]
          %79 = vst [vmem:[%s57 + $0x50] sm:$0xff] %v78
          %v80 = vld [vmem:[%s56 + $0x58] sm:$0xff]
          %81 = vst [vmem:[%s57 + $0x58] sm:$0xff] %v80
          %v82 = vld [vmem:[%s56 + $0x60] sm:$0xff]
          %83 = vst [vmem:[%s57 + $0x60] sm:$0xff] %v82
          %v84 = vld [vmem:[%s56 + $0x68] sm:$0xff]
          %85 = vst [vmem:[%s57 + $0x68] sm:$0xff] %v84
          %v86 = vld [vmem:[%s56 + $0x70] sm:$0xff]
          %87 = vst [vmem:[%s57 + $0x70] sm:$0xff] %v86
          %v88 = vld [vmem:[%s56 + $0x78] sm:$0xff]
          %89 = vst [vmem:[%s57 + $0x78] sm:$0xff] %v88
        $region49: #{doc_tower_forward.1} parent=43 // loop_footer
          %s55 = sadd.s32 1, %s51
        $region50: #{doc_tower_forward.1} parent=43 // loop_footer_branch
          %50 = sbr.rel target = $region46
        $region51: #{doc_tower_forward.1} parent=43 // loop_exit
          _
      $region44: #{doc_tower_forward.1} parent=28 // pred_fallthru
        _
      %p90 = pneg %p46
      // Predicated region
      $region52: #{doc_tower_forward.1} parent=28 // pred_check
        _
      $region53: #{doc_tower_forward.1} parent=28 // pred_check_branch
        %92 = sbr.rel (%p46) target = $region55
      $region54: #{doc_tower_forward.1} parent=28 // pred_region
        %s93 = sand.u32 128, 7
      $region55: #{doc_tower_forward.1} parent=28 // pred_fallthru
        _
    $region29: #{doc_tower_forward.1} parent=24 // pred_fallthru
      _
    // Predicated region
    $region30: #{doc_tower_forward.1} parent=24 // pred_check
      %p31 = pneg %p27
    $region31: #{doc_tower_forward.1} parent=24 // pred_check_branch
      %33 = sbr.rel (%p31) target = $region33
    $region32: #{doc_tower_forward.1} parent=24 // pred_region
      %s34 = sshllo.u32 0, 128
      loop: start=0, step=1, limit=1
      $region34: #{doc_tower_forward.1} parent=32 // loop_pre_header
        _
      $region35: #{doc_tower_forward.1} parent=32 // loop_header
        %s36 = sphi 0, %s40
        %p37 = scmp.ge.s32.totalorder %s36, 1
        %s41 = sphi %s4, %s4
        %s42 = sphi [#allocation4], [#allocation4]
      $region36: #{doc_tower_forward.1} parent=32 // loop_header_branch
        %39 = sbr.rel (%p37) target = $region40
      $region37: #{doc_tower_forward.1} parent=32 // loop_body
        %v43 = vld [vmem:[%s41] sm:%s34]
        %44 = vst [vmem:[%s42] sm:%s34] %v43
      $region38: #{doc_tower_forward.1} parent=32 // loop_footer
        %s40 = sadd.s32 1, %s36
      $region39: #{doc_tower_forward.1} parent=32 // loop_footer_branch
        %35 = sbr.rel target = $region35
      $region40: #{doc_tower_forward.1} parent=32 // loop_exit
        _
    $region33: #{doc_tower_forward.1} parent=24 // pred_fallthru
      _
    // Predicated region
    $region56: #{doc_tower_forward.1} parent=24 // pred_check
      _
    $region57: #{doc_tower_forward.1} parent=24 // pred_check_branch
      %96 = sbr.rel (0) target = $region59
    $region58: #{doc_tower_forward.1} parent=24 // pred_region
      %97 = vsyncadd [#allocation5], 2048
    $region59: #{doc_tower_forward.1} parent=24 // pred_fallthru
      _
  $region25: #{doc_tower_forward.1} parent=0 // pred_fallthru
    _
  %v98 = vld [vmem:[%s0] sm:$0xff]
  %v99 = vld [vmem:[%s0 + $0x8] sm:$0xff]
  %v100 = vld [vmem:[%s0 + $0x10] sm:$0xff]
  %v101 = vld [vmem:[%s0 + $0x18] sm:$0xff]
  %v102 = vld [vmem:[%s0 + $0x20] sm:$0xff]
  %v103 = vld [vmem:[%s0 + $0x28] sm:$0xff]
  %v104 = vld [vmem:[%s0 + $0x30] sm:$0xff]
  %v105 = vld [vmem:[%s0 + $0x38] sm:$0xff]
  %v106 = vld [vmem:[%s1] sm:$0xff]
  %v107 = vld [vmem:[%s1 + $0x8] sm:$0xff]
  %v108 = vld [vmem:[%s1 + $0x10] sm:$0xff]
  %v109 = vld [vmem:[%s1 + $0x18] sm:$0xff]
  %vm110 = vcmask 261120
  %v112 = vsel %vm110, %v98, 0
  %v115 = vsel %vm110, %v99, 0
  %v118 = vsel %vm110, %v100, 0
  %v121 = vsel %vm110, %v101, 0
  %v124 = vsel %vm110, %v102, 0
  %v127 = vsel %vm110, %v103, 0
  %v130 = vsel %vm110, %v104, 0
  %v133 = vsel %vm110, %v105, 0
  %135 = vmatprep.subr.mxu0 0.0
  %136 = vmatpush1.msra.mxu0 %v106
  %137 = vmatprep.subr.mxu0 0.0
  %138 = vmatpush1.msra.mxu0 %v107
  %139 = vmatprep.subr.mxu0 0.0
  %140 = vmatpush1.msra.mxu0 %v108
  %141 = vmatprep.subr.mxu0 0.0
  %142 = vmatpush1.msra.mxu0 %v109
  %143 = vmatprep.subr.mxu0 0.0
  %144 = vmatpush1.msra.mxu0 0.0
  %145 = vmatprep.subr.mxu0 0.0
  %146 = vmatpush1.msra.mxu0 0.0
  %147 = vmatprep.subr.mxu0 0.0
  %148 = vmatpush1.msra.mxu0 0.0
  %149 = vmatprep.subr.mxu0 0.0
  %150 = vmatpush1.msra.mxu0 0.0
  %151 = vmatprep.subr.mxu0 0.0
  %152 = vmatpush1.msra.mxu0 0.0
  %153 = vmatprep.subr.mxu0 0.0
  %154 = vmatpush1.msra.mxu0 0.0
  %155 = vmatprep.subr.mxu0 0.0
  %156 = vmatpush1.msra.mxu0 0.0
  %157 = vmatprep.subr.mxu0 0.0
  %158 = vmatpush1.msra.mxu0 0.0
  %159 = vmatprep.subr.mxu0 0.0
  %160 = vmatpush1.msra.mxu0 0.0
  %161 = vmatprep.subr.mxu0 0.0
  %162 = vmatpush1.msra.mxu0 0.0
  %163 = vmatprep.subr.mxu0 0.0
  %164 = vmatpush1.msra.mxu0 0.0
  %165 = vmatprep.subr.mxu0 0.0
  %166 = vmatpush1.msra.mxu0 0.0
  %167 = vmatprep.subr.mxu0 0.0
  %168 = vmatpush1.msra.mxu0 0.0
  %169 = vmatprep.subr.mxu0 0.0
  %170 = vmatpush1.msra.mxu0 0.0
  %171 = vmatprep.subr.mxu0 0.0
  %172 = vmatpush1.msra.mxu0 0.0
  %173 = vmatprep.subr.mxu0 0.0
  %174 = vmatpush1.msra.mxu0 0.0
  %175 = vmatprep.subr.mxu0 0.0
  %176 = vmatpush1.msra.mxu0 0.0
  %177 = vmatprep.subr.mxu0 0.0
  %178 = vmatpush1.msra.mxu0 0.0
  %179 = vmatprep.subr.mxu0 0.0
  %180 = vmatpush1.msra.mxu0 0.0
  %181 = vmatprep.subr.mxu0 0.0
  %182 = vmatpush1.msra.mxu0 0.0
  %183 = vmatprep.subr.mxu0 0.0
  %184 = vmatpush1.msra.mxu0 0.0
  %185 = vmatprep.subr.mxu0 0.0
  %186 = vmatpush1.msra.mxu0 0.0
  %187 = vmatprep.subr.mxu0 0.0
  %188 = vmatpush1.msra.mxu0 0.0
  %189 = vmatprep.subr.mxu0 0.0
  %190 = vmatpush1.msra.mxu0 0.0
  %191 = vmatprep.subr.mxu0 0.0
  %192 = vmatpush1.msra.mxu0 0.0
  %193 = vmatprep.subr.mxu0 0.0
  %194 = vmatpush1.msra.mxu0 0.0
  %195 = vmatprep.subr.mxu0 0.0
  %196 = vmatpush1.msra.mxu0 0.0
  %197 = vmatprep.subr.mxu0 0.0
  %198 = vmatpush1.msra.mxu0 0.0
  %199 = vmatprep.mubr.f32.mxu0 0.0
  %200 = vmatmul.mubr.f32.gmra.mrb[0].mxu0 %v112
  %v201 = vpop.f32.mrb[0].mxu0
  %v202 = vadd.f32 0.0, %v201
  %v203 = vpop.f32.mrb[0].mxu0
  %204 = vmatprep.mubr.f32.mxu0 0.0
  %205 = vmatmul.mubr.f32.gmra.mrb[0].mxu0 %v115
  %v206 = vpop.f32.mrb[0].mxu0
  %v207 = vadd.f32 0.0, %v206
  %v208 = vpop.f32.mrb[0].mxu0
  %209 = vmatprep.mubr.f32.mxu0 0.0
  %210 = vmatmul.mubr.f32.gmra.mrb[0].mxu0 %v118
  %v211 = vpop.f32.mrb[0].mxu0
  %v212 = vadd.f32 0.0, %v211
  %v213 = vpop.f32.mrb[0].mxu0
  %214 = vmatprep.mubr.f32.mxu0 0.0
  %215 = vmatmul.mubr.f32.gmra.mrb[0].mxu0 %v121
  %v216 = vpop.f32.mrb[0].mxu0
  %v217 = vadd.f32 0.0, %v216
  %v218 = vpop.f32.mrb[0].mxu0
  %219 = vmatprep.mubr.f32.mxu0 0.0
  %220 = vmatmul.mubr.f32.gmra.mrb[0].mxu0 %v124
  %v221 = vpop.f32.mrb[0].mxu0
  %v222 = vadd.f32 0.0, %v221
  %v223 = vpop.f32.mrb[0].mxu0
  %224 = vmatprep.mubr.f32.mxu0 0.0
  %225 = vmatmul.mubr.f32.gmra.mrb[0].mxu0 %v127
  %v226 = vpop.f32.mrb[0].mxu0
  %v227 = vadd.f32 0.0, %v226
  %v228 = vpop.f32.mrb[0].mxu0
  %229 = vmatprep.mubr.f32.mxu0 0.0
  %230 = vmatmul.mubr.f32.gmra.mrb[0].mxu0 %v130
  %v231 = vpop.f32.mrb[0].mxu0
  %v232 = vadd.f32 0.0, %v231
  %v233 = vpop.f32.mrb[0].mxu0
  %234 = vmatprep.mubr.f32.mxu0 0.0
  %235 = vmatmul.mubr.f32.gmra.mrb[0].mxu0 %v133
  %v236 = vpop.f32.mrb[0].mxu0
  %v237 = vadd.f32 0.0, %v236
  %v238 = vpop.f32.mrb[0].mxu0
  %239 = vdwg.mxu0
  %v240 = vld [vmem:[%s3] sm:$0x1]
  %v242 = vlaneseq
  %v243 = vshrl.u32 %v242, 7
  %v244 = vsub.s32 0, %v243
  %v245 = vrot.slane %v240, %v244
  %v247 = vadd.f32 %v202, %v245
  %v248 = vadd.f32 %v207, %v245
  %v249 = vadd.f32 %v212, %v245
  %v250 = vadd.f32 %v217, %v245
  %v251 = vadd.f32 %v222, %v245
  %v252 = vadd.f32 %v227, %v245
  %v253 = vadd.f32 %v232, %v245
  %v254 = vadd.f32 %v237, %v245
  %255 = vst [vmem:[#allocation3] sm:$0xff] %v247
  %256 = vst [vmem:[#allocation3 + $0x8] sm:$0xff] %v248
  %257 = vst [vmem:[#allocation3 + $0x10] sm:$0xff] %v249
  %258 = vst [vmem:[#allocation3 + $0x18] sm:$0xff] %v250
  %259 = vst [vmem:[#allocation3 + $0x20] sm:$0xff] %v251
  %260 = vst [vmem:[#allocation3 + $0x28] sm:$0xff] %v252
  %261 = vst [vmem:[#allocation3 + $0x30] sm:$0xff] %v253
  %262 = vst [vmem:[#allocation3 + $0x38] sm:$0xff] %v254
  %v263 = vld [vmem:[%s2] sm:$0xff]
  %v264 = vld [vmem:[%s2 + $0x8] sm:$0xff]
  %v265 = vld [vmem:[%s2 + $0x10] sm:$0xff]
  %v266 = vld [vmem:[%s2 + $0x18] sm:$0xff]
  %v267 = vld [vmem:[%s2 + $0x20] sm:$0xff]
  %v268 = vld [vmem:[%s2 + $0x28] sm:$0xff]
  %v269 = vld [vmem:[%s2 + $0x30] sm:$0xff]
  %v270 = vld [vmem:[%s2 + $0x38] sm:$0xff]
  %v271 = vld [vmem:[%s2 + $0x40] sm:$0xff]
  %v272 = vld [vmem:[%s2 + $0x48] sm:$0xff]
  %v273 = vld [vmem:[%s2 + $0x50] sm:$0xff]
  %v274 = vld [vmem:[%s2 + $0x58] sm:$0xff]
  %v275 = vld [vmem:[%s2 + $0x60] sm:$0xff]
  %v276 = vld [vmem:[%s2 + $0x68] sm:$0xff]
  %v277 = vld [vmem:[%s2 + $0x70] sm:$0xff]
  %v278 = vld [vmem:[%s2 + $0x78] sm:$0xff]
  %v279 = vld [vmem:[#allocation2] sm:$0xff]
  %v280 = vld [vmem:[#allocation3] sm:$0xff]
  %281 = vmatprep.subr.mxu0 0.0
  %282 = vmatpush1.msra.mxu0 %v263
  %283 = vmatprep.subr.mxu0 0.0
  %284 = vmatpush1.msra.mxu0 %v264
  %285 = vmatprep.subr.mxu0 0.0
  %286 = vmatpush1.msra.mxu0 %v265
  %287 = vmatprep.subr.mxu0 0.0
  %288 = vmatpush1.msra.mxu0 %v266
  %289 = vmatprep.subr.mxu0 0.0
  %290 = vmatpush1.msra.mxu0 %v267
  %291 = vmatprep.subr.mxu0 0.0
  %292 = vmatpush1.msra.mxu0 %v268
  %293 = vmatprep.subr.mxu0 0.0
  %294 = vmatpush1.msra.mxu0 %v269
  %295 = vmatprep.subr.mxu0 0.0
  %296 = vmatpush1.msra.mxu0 %v270
  %297 = vmatprep.subr.mxu0 0.0
  %298 = vmatpush1.msra.mxu0 %v271
  %299 = vmatprep.subr.mxu0 0.0
  %300 = vmatpush1.msra.mxu0 %v272
  %301 = vmatprep.subr.mxu0 0.0
  %302 = vmatpush1.msra.mxu0 %v273
  %303 = vmatprep.subr.mxu0 0.0
  %304 = vmatpush1.msra.mxu0 %v274
  %305 = vmatprep.subr.mxu0 0.0
  %306 = vmatpush1.msra.mxu0 %v275
  %307 = vmatprep.subr.mxu0 0.0
  %308 = vmatpush1.msra.mxu0 %v276
  %309 = vmatprep.subr.mxu0 0.0
  %310 = vmatpush1.msra.mxu0 %v277
  %311 = vmatprep.subr.mxu0 0.0
  %312 = vmatpush1.msra.mxu0 %v278
  %313 = vmatprep.subr.mxu0 0.0
  %314 = vmatpush1.msra.mxu0 0.0
  %315 = vmatprep.subr.mxu0 0.0
  %316 = vmatpush1.msra.mxu0 0.0
  %317 = vmatprep.subr.mxu0 0.0
  %318 = vmatpush1.msra.mxu0 0.0
  %319 = vmatprep.subr.mxu0 0.0
  %320 = vmatpush1.msra.mxu0 0.0
  %321 = vmatprep.subr.mxu0 0.0
  %322 = vmatpush1.msra.mxu0 0.0
  %323 = vmatprep.subr.mxu0 0.0
  %324 = vmatpush1.msra.mxu0 0.0
  %325 = vmatprep.subr.mxu0 0.0
  %326 = vmatpush1.msra.mxu0 0.0
  %327 = vmatprep.subr.mxu0 0.0
  %328 = vmatpush1.msra.mxu0 0.0
  %329 = vmatprep.subr.mxu0 0.0
  %330 = vmatpush1.msra.mxu0 0.0
  %331 = vmatprep.subr.mxu0 0.0
  %332 = vmatpush1.msra.mxu0 0.0
  %333 = vmatprep.subr.mxu0 0.0
  %334 = vmatpush1.msra.mxu0 0.0
  %335 = vmatprep.subr.mxu0 0.0
  %336 = vmatpush1.msra.mxu0 0.0
  %337 = vmatprep.subr.mxu0 0.0
  %338 = vmatpush1.msra.mxu0 0.0
  %339 = vmatprep.subr.mxu0 0.0
  %340 = vmatpush1.msra.mxu0 0.0
  %341 = vmatprep.subr.mxu0 0.0
  %342 = vmatpush1.msra.mxu0 0.0
  %343 = vmatprep.subr.mxu0 0.0
  %344 = vmatpush1.msra.mxu0 0.0
  %345 = vmatprep.mubr.f32.mxu0 0.0
  %346 = vmatmul.mubr.f32.gmra.mrb[0].mxu0 %v279
  %v347 = vpop.f32.mrb[0].mxu0
  %v348 = vadd.f32 0.0, %v347
  %v349 = vpop.f32.mrb[0].mxu0
  %350 = vdwg.mxu0
  %v351 = vadd.f32 %v280, %v348
  %v352 = vtanh.pop %v351
  %s353 = scalar_lea.vmem [#allocation3], 8
  %v354 = vld [vmem:[%s353] sm:$0xff]
  %355 = vmatprep.subr.mxu0 0.0
  %356 = vmatpush1.msra.mxu0 %v263
  %357 = vmatprep.subr.mxu0 0.0
  %358 = vmatpush1.msra.mxu0 %v264
  %359 = vmatprep.subr.mxu0 0.0
  %360 = vmatpush1.msra.mxu0 %v265
  %361 = vmatprep.subr.mxu0 0.0
  %362 = vmatpush1.msra.mxu0 %v266
  %363 = vmatprep.subr.mxu0 0.0
  %364 = vmatpush1.msra.mxu0 %v267
  %365 = vmatprep.subr.mxu0 0.0
  %366 = vmatpush1.msra.mxu0 %v268
  %367 = vmatprep.subr.mxu0 0.0
  %368 = vmatpush1.msra.mxu0 %v269
  %369 = vmatprep.subr.mxu0 0.0
  %370 = vmatpush1.msra.mxu0 %v270
  %371 = vmatprep.subr.mxu0 0.0
  %372 = vmatpush1.msra.mxu0 %v271
  %373 = vmatprep.subr.mxu0 0.0
  %374 = vmatpush1.msra.mxu0 %v272
  %375 = vmatprep.subr.mxu0 0.0
  %376 = vmatpush1.msra.mxu0 %v273
  %377 = vmatprep.subr.mxu0 0.0
  %378 = vmatpush1.msra.mxu0 %v274
  %379 = vmatprep.subr.mxu0 0.0
  %380 = vmatpush1.msra.mxu0 %v275
  %381 = vmatprep.subr.mxu0 0.0
  %382 = vmatpush1.msra.mxu0 %v276
  %383 = vmatprep.subr.mxu0 0.0
  %384 = vmatpush1.msra.mxu0 %v277
  %385 = vmatprep.subr.mxu0 0.0
  %386 = vmatpush1.msra.mxu0 %v278
  %387 = vmatprep.subr.mxu0 0.0
  %388 = vmatpush1.msra.mxu0 0.0
  %389 = vmatprep.subr.mxu0 0.0
  %390 = vmatpush1.msra.mxu0 0.0
  %391 = vmatprep.subr.mxu0 0.0
  %392 = vmatpush1.msra.mxu0 0.0
  %393 = vmatprep.subr.mxu0 0.0
  %394 = vmatpush1.msra.mxu0 0.0
  %395 = vmatprep.subr.mxu0 0.0
  %396 = vmatpush1.msra.mxu0 0.0
  %397 = vmatprep.subr.mxu0 0.0
  %398 = vmatpush1.msra.mxu0 0.0
  %399 = vmatprep.subr.mxu0 0.0
  %400 = vmatpush1.msra.mxu0 0.0
  %401 = vmatprep.subr.mxu0 0.0
  %402 = vmatpush1.msra.mxu0 0.0
  %403 = vmatprep.subr.mxu0 0.0
  %404 = vmatpush1.msra.mxu0 0.0
  %405 = vmatprep.subr.mxu0 0.0
  %406 = vmatpush1.msra.mxu0 0.0
  %407 = vmatprep.subr.mxu0 0.0
  %408 = vmatpush1.msra.mxu0 0.0
  %409 = vmatprep.subr.mxu0 0.0
  %410 = vmatpush1.msra.mxu0 0.0
  %411 = vmatprep.subr.mxu0 0.0
  %412 = vmatpush1.msra.mxu0 0.0
  %413 = vmatprep.subr.mxu0 0.0
  %414 = vmatpush1.msra.mxu0 0.0
  %415 = vmatprep.subr.mxu0 0.0
  %416 = vmatpush1.msra.mxu0 0.0
  %417 = vmatprep.subr.mxu0 0.0
  %418 = vmatpush1.msra.mxu0 0.0
  %419 = vmatprep.mubr.f32.mxu0 0.0
  %420 = vmatmul.mubr.f32.gmra.mrb[0].mxu0 %v352
  %v421 = vpop.f32.mrb[0].mxu0
  %v422 = vadd.f32 0.0, %v421
  %v423 = vpop.f32.mrb[0].mxu0
  %424 = vdwg.mxu0
  %v425 = vadd.f32 %v354, %v422
  %v426 = vtanh.pop %v425
  %s427 = scalar_lea.vmem [#allocation3], 16
  %v428 = vld [vmem:[%s427] sm:$0xff]
  %429 = vmatprep.subr.mxu0 0.0
  %430 = vmatpush1.msra.mxu0 %v263
  %431 = vmatprep.subr.mxu0 0.0
  %432 = vmatpush1.msra.mxu0 %v264
  %433 = vmatprep.subr.mxu0 0.0
  %434 = vmatpush1.msra.mxu0 %v265
  %435 = vmatprep.subr.mxu0 0.0
  %436 = vmatpush1.msra.mxu0 %v266
  %437 = vmatprep.subr.mxu0 0.0
  %438 = vmatpush1.msra.mxu0 %v267
  %439 = vmatprep.subr.mxu0 0.0
  %440 = vmatpush1.msra.mxu0 %v268
  %441 = vmatprep.subr.mxu0 0.0
  %442 = vmatpush1.msra.mxu0 %v269
  %443 = vmatprep.subr.mxu0 0.0
  %444 = vmatpush1.msra.mxu0 %v270
  %445 = vmatprep.subr.mxu0 0.0
  %446 = vmatpush1.msra.mxu0 %v271
  %447 = vmatprep.subr.mxu0 0.0
  %448 = vmatpush1.msra.mxu0 %v272
  %449 = vmatprep.subr.mxu0 0.0
  %450 = vmatpush1.msra.mxu0 %v273
  %451 = vmatprep.subr.mxu0 0.0
  %452 = vmatpush1.msra.mxu0 %v274
  %453 = vmatprep.subr.mxu0 0.0
  %454 = vmatpush1.msra.mxu0 %v275
  %455 = vmatprep.subr.mxu0 0.0
  %456 = vmatpush1.msra.mxu0 %v276
  %457 = vmatprep.subr.mxu0 0.0
  %458 = vmatpush1.msra.mxu0 %v277
  %459 = vmatprep.subr.mxu0 0.0
  %460 = vmatpush1.msra.mxu0 %v278
  %461 = vmatprep.subr.mxu0 0.0
  %462 = vmatpush1.msra.mxu0 0.0
  %463 = vmatprep.subr.mxu0 0.0
  %464 = vmatpush1.msra.mxu0 0.0
  %465 = vmatprep.subr.mxu0 0.0
  %466 = vmatpush1.msra.mxu0 0.0
  %467 = vmatprep.subr.mxu0 0.0
  %468 = vmatpush1.msra.mxu0 0.0
  %469 = vmatprep.subr.mxu0 0.0
  %470 = vmatpush1.msra.mxu0 0.0
  %471 = vmatprep.subr.mxu0 0.0
  %472 = vmatpush1.msra.mxu0 0.0
  %473 = vmatprep.subr.mxu0 0.0
  %474 = vmatpush1.msra.mxu0 0.0
  %475 = vmatprep.subr.mxu0 0.0
  %476 = vmatpush1.msra.mxu0 0.0
  %477 = vmatprep.subr.mxu0 0.0
  %478 = vmatpush1.msra.mxu0 0.0
  %479 = vmatprep.subr.mxu0 0.0
  %480 = vmatpush1.msra.mxu0 0.0
  %481 = vmatprep.subr.mxu0 0.0
  %482 = vmatpush1.msra.mxu0 0.0
  %483 = vmatprep.subr.mxu0 0.0
  %484 = vmatpush1.msra.mxu0 0.0
  %485 = vmatprep.subr.mxu0 0.0
  %486 = vmatpush1.msra.mxu0 0.0
  %487 = vmatprep.subr.mxu0 0.0
  %488 = vmatpush1.msra.mxu0 0.0
  %489 = vmatprep.subr.mxu0 0.0
  %490 = vmatpush1.msra.mxu0 0.0
  %491 = vmatprep.subr.mxu0 0.0
  %492 = vmatpush1.msra.mxu0 0.0
  %493 = vmatprep.mubr.f32.mxu0 0.0
  %494 = vmatmul.mubr.f32.gmra.mrb[0].mxu0 %v426
  %v495 = vpop.f32.mrb[0].mxu0
  %v496 = vadd.f32 0.0, %v495
  %v497 = vpop.f32.mrb[0].mxu0
  %498 = vdwg.mxu0
  %v499 = vadd.f32 %v428, %v496
  %v500 = vtanh.pop %v499
  %s501 = scalar_lea.vmem [#allocation3], 24
  %v502 = vld [vmem:[%s501] sm:$0xff]
  %503 = vmatprep.subr.mxu0 0.0
  %504 = vmatpush1.msra.mxu0 %v263
  %505 = vmatprep.subr.mxu0 0.0
  %506 = vmatpush1.msra.mxu0 %v264
  %507 = vmatprep.subr.mxu0 0.0
  %508 = vmatpush1.msra.mxu0 %v265
  %509 = vmatprep.subr.mxu0 0.0
  %510 = vmatpush1.msra.mxu0 %v266
  %511 = vmatprep.subr.mxu0 0.0
  %512 = vmatpush1.msra.mxu0 %v267
  %513 = vmatprep.subr.mxu0 0.0
  %514 = vmatpush1.msra.mxu0 %v268
  %515 = vmatprep.subr.mxu0 0.0
  %516 = vmatpush1.msra.mxu0 %v269
  %517 = vmatprep.subr.mxu0 0.0
  %518 = vmatpush1.msra.mxu0 %v270
  %519 = vmatprep.subr.mxu0 0.0
  %520 = vmatpush1.msra.mxu0 %v271
  %521 = vmatprep.subr.mxu0 0.0
  %522 = vmatpush1.msra.mxu0 %v272
  %523 = vmatprep.subr.mxu0 0.0
  %524 = vmatpush1.msra.mxu0 %v273
  %525 = vmatprep.subr.mxu0 0.0
  %526 = vmatpush1.msra.mxu0 %v274
  %527 = vmatprep.subr.mxu0 0.0
  %528 = vmatpush1.msra.mxu0 %v275
  %529 = vmatprep.subr.mxu0 0.0
  %530 = vmatpush1.msra.mxu0 %v276
  %531 = vmatprep.subr.mxu0 0.0
  %532 = vmatpush1.msra.mxu0 %v277
  %533 = vmatprep.subr.mxu0 0.0
  %534 = vmatpush1.msra.mxu0 %v278
  %535 = vmatprep.subr.mxu0 0.0
  %536 = vmatpush1.msra.mxu0 0.0
  %537 = vmatprep.subr.mxu0 0.0
  %538 = vmatpush1.msra.mxu0 0.0
  %539 = vmatprep.subr.mxu0 0.0
  %540 = vmatpush1.msra.mxu0 0.0
  %541 = vmatprep.subr.mxu0 0.0
  %542 = vmatpush1.msra.mxu0 0.0
  %543 = vmatprep.subr.mxu0 0.0
  %544 = vmatpush1.msra.mxu0 0.0
  %545 = vmatprep.subr.mxu0 0.0
  %546 = vmatpush1.msra.mxu0 0.0
  %547 = vmatprep.subr.mxu0 0.0
  %548 = vmatpush1.msra.mxu0 0.0
  %549 = vmatprep.subr.mxu0 0.0
  %550 = vmatpush1.msra.mxu0 0.0
  %551 = vmatprep.subr.mxu0 0.0
  %552 = vmatpush1.msra.mxu0 0.0
  %553 = vmatprep.subr.mxu0 0.0
  %554 = vmatpush1.msra.mxu0 0.0
  %555 = vmatprep.subr.mxu0 0.0
  %556 = vmatpush1.msra.mxu0 0.0
  %557 = vmatprep.subr.mxu0 0.0
  %558 = vmatpush1.msra.mxu0 0.0
  %559 = vmatprep.subr.mxu0 0.0
  %560 = vmatpush1.msra.mxu0 0.0
  %561 = vmatprep.subr.mxu0 0.0
  %562 = vmatpush1.msra.mxu0 0.0
  %563 = vmatprep.subr.mxu0 0.0
  %564 = vmatpush1.msra.mxu0 0.0
  %565 = vmatprep.subr.mxu0 0.0
  %566 = vmatpush1.msra.mxu0 0.0
  %567 = vmatprep.mubr.f32.mxu0 0.0
  %568 = vmatmul.mubr.f32.gmra.mrb[0].mxu0 %v500
  %v569 = vpop.f32.mrb[0].mxu0
  %v570 = vadd.f32 0.0, %v569
  %v571 = vpop.f32.mrb[0].mxu0
  %572 = vdwg.mxu0
  %v573 = vadd.f32 %v502, %v570
  %v574 = vtanh.pop %v573
  %s575 = scalar_lea.vmem [#allocation3], 32
  %v576 = vld [vmem:[%s575] sm:$0xff]
  %577 = vmatprep.subr.mxu0 0.0
  %578 = vmatpush1.msra.mxu0 %v263
  %579 = vmatprep.subr.mxu0 0.0
  %580 = vmatpush1.msra.mxu0 %v264
  %581 = vmatprep.subr.mxu0 0.0
  %582 = vmatpush1.msra.mxu0 %v265
  %583 = vmatprep.subr.mxu0 0.0
  %584 = vmatpush1.msra.mxu0 %v266
  %585 = vmatprep.subr.mxu0 0.0
  %586 = vmatpush1.msra.mxu0 %v267
  %587 = vmatprep.subr.mxu0 0.0
  %588 = vmatpush1.msra.mxu0 %v268
  %589 = vmatprep.subr.mxu0 0.0
  %590 = vmatpush1.msra.mxu0 %v269
  %591 = vmatprep.subr.mxu0 0.0
  %592 = vmatpush1.msra.mxu0 %v270
  %593 = vmatprep.subr.mxu0 0.0
  %594 = vmatpush1.msra.mxu0 %v271
  %595 = vmatprep.subr.mxu0 0.0
  %596 = vmatpush1.msra.mxu0 %v272
  %597 = vmatprep.subr.mxu0 0.0
  %598 = vmatpush1.msra.mxu0 %v273
  %599 = vmatprep.subr.mxu0 0.0
  %600 = vmatpush1.msra.mxu0 %v274
  %601 = vmatprep.subr.mxu0 0.0
  %602 = vmatpush1.msra.mxu0 %v275
  %603 = vmatprep.subr.mxu0 0.0
  %604 = vmatpush1.msra.mxu0 %v276
  %605 = vmatprep.subr.mxu0 0.0
  %606 = vmatpush1.msra.mxu0 %v277
  %607 = vmatprep.subr.mxu0 0.0
  %608 = vmatpush1.msra.mxu0 %v278
  %609 = vmatprep.subr.mxu0 0.0
  %610 = vmatpush1.msra.mxu0 0.0
  %611 = vmatprep.subr.mxu0 0.0
  %612 = vmatpush1.msra.mxu0 0.0
  %613 = vmatprep.subr.mxu0 0.0
  %614 = vmatpush1.msra.mxu0 0.0
  %615 = vmatprep.subr.mxu0 0.0
  %616 = vmatpush1.msra.mxu0 0.0
  %617 = vmatprep.subr.mxu0 0.0
  %618 = vmatpush1.msra.mxu0 0.0
  %619 = vmatprep.subr.mxu0 0.0
  %620 = vmatpush1.msra.mxu0 0.0
  %621 = vmatprep.subr.mxu0 0.0
  %622 = vmatpush1.msra.mxu0 0.0
  %623 = vmatprep.subr.mxu0 0.0
  %624 = vmatpush1.msra.mxu0 0.0
  %625 = vmatprep.subr.mxu0 0.0
  %626 = vmatpush1.msra.mxu0 0.0
  %627 = vmatprep.subr.mxu0 0.0
  %628 = vmatpush1.msra.mxu0 0.0
  %629 = vmatprep.subr.mxu0 0.0
  %630 = vmatpush1.msra.mxu0 0.0
  %631 = vmatprep.subr.mxu0 0.0
  %632 = vmatpush1.msra.mxu0 0.0
  %633 = vmatprep.subr.mxu0 0.0
  %634 = vmatpush1.msra.mxu0 0.0
  %635 = vmatprep.subr.mxu0 0.0
  %636 = vmatpush1.msra.mxu0 0.0
  %637 = vmatprep.subr.mxu0 0.0
  %638 = vmatpush1.msra.mxu0 0.0
  %639 = vmatprep.subr.mxu0 0.0
  %640 = vmatpush1.msra.mxu0 0.0
  %641 = vmatprep.mubr.f32.mxu0 0.0
  %642 = vmatmul.mubr.f32.gmra.mrb[0].mxu0 %v574
  %v643 = vpop.f32.mrb[0].mxu0
  %v644 = vadd.f32 0.0, %v643
  %v645 = vpop.f32.mrb[0].mxu0
  %646 = vdwg.mxu0
  %v647 = vadd.f32 %v576, %v644
  %v648 = vtanh.pop %v647
  %s649 = scalar_lea.vmem [#allocation3], 40
  %v650 = vld [vmem:[%s649] sm:$0xff]
  %651 = vmatprep.subr.mxu0 0.0
  %652 = vmatpush1.msra.mxu0 %v263
  %653 = vmatprep.subr.mxu0 0.0
  %654 = vmatpush1.msra.mxu0 %v264
  %655 = vmatprep.subr.mxu0 0.0
  %656 = vmatpush1.msra.mxu0 %v265
  %657 = vmatprep.subr.mxu0 0.0
  %658 = vmatpush1.msra.mxu0 %v266
  %659 = vmatprep.subr.mxu0 0.0
  %660 = vmatpush1.msra.mxu0 %v267
  %661 = vmatprep.subr.mxu0 0.0
  %662 = vmatpush1.msra.mxu0 %v268
  %663 = vmatprep.subr.mxu0 0.0
  %664 = vmatpush1.msra.mxu0 %v269
  %665 = vmatprep.subr.mxu0 0.0
  %666 = vmatpush1.msra.mxu0 %v270
  %667 = vmatprep.subr.mxu0 0.0
  %668 = vmatpush1.msra.mxu0 %v271
  %669 = vmatprep.subr.mxu0 0.0
  %670 = vmatpush1.msra.mxu0 %v272
  %671 = vmatprep.subr.mxu0 0.0
  %672 = vmatpush1.msra.mxu0 %v273
  %673 = vmatprep.subr.mxu0 0.0
  %674 = vmatpush1.msra.mxu0 %v274
  %675 = vmatprep.subr.mxu0 0.0
  %676 = vmatpush1.msra.mxu0 %v275
  %677 = vmatprep.subr.mxu0 0.0
  %678 = vmatpush1.msra.mxu0 %v276
  %679 = vmatprep.subr.mxu0 0.0
  %680 = vmatpush1.msra.mxu0 %v277
  %681 = vmatprep.subr.mxu0 0.0
  %682 = vmatpush1.msra.mxu0 %v278
  %683 = vmatprep.subr.mxu0 0.0
  %684 = vmatpush1.msra.mxu0 0.0
  %685 = vmatprep.subr.mxu0 0.0
  %686 = vmatpush1.msra.mxu0 0.0
  %687 = vmatprep.subr.mxu0 0.0
  %688 = vmatpush1.msra.mxu0 0.0
  %689 = vmatprep.subr.mxu0 0.0
  %690 = vmatpush1.msra.mxu0 0.0
  %691 = vmatprep.subr.mxu0 0.0
  %692 = vmatpush1.msra.mxu0 0.0
  %693 = vmatprep.subr.mxu0 0.0
  %694 = vmatpush1.msra.mxu0 0.0
  %695 = vmatprep.subr.mxu0 0.0
  %696 = vmatpush1.msra.mxu0 0.0
  %697 = vmatprep.subr.mxu0 0.0
  %698 = vmatpush1.msra.mxu0 0.0
  %699 = vmatprep.subr.mxu0 0.0
  %700 = vmatpush1.msra.mxu0 0.0
  %701 = vmatprep.subr.mxu0 0.0
  %702 = vmatpush1.msra.mxu0 0.0
  %703 = vmatprep.subr.mxu0 0.0
  %704 = vmatpush1.msra.mxu0 0.0
  %705 = vmatprep.subr.mxu0 0.0
  %706 = vmatpush1.msra.mxu0 0.0
  %707 = vmatprep.subr.mxu0 0.0
  %708 = vmatpush1.msra.mxu0 0.0
  %709 = vmatprep.subr.mxu0 0.0
  %710 = vmatpush1.msra.mxu0 0.0
  %711 = vmatprep.subr.mxu0 0.0
  %712 = vmatpush1.msra.mxu0 0.0
  %713 = vmatprep.subr.mxu0 0.0
  %714 = vmatpush1.msra.mxu0 0.0
  %715 = vmatprep.mubr.f32.mxu0 0.0
  %716 = vmatmul.mubr.f32.gmra.mrb[0].mxu0 %v648
  %v717 = vpop.f32.mrb[0].mxu0
  %v718 = vadd.f32 0.0, %v717
  %v719 = vpop.f32.mrb[0].mxu0
  %720 = vdwg.mxu0
  %v721 = vadd.f32 %v650, %v718
  %v722 = vtanh.pop %v721
  %s723 = scalar_lea.vmem [#allocation3], 48
  %v724 = vld [vmem:[%s723] sm:$0xff]
  %725 = vmatprep.subr.mxu0 0.0
  %726 = vmatpush1.msra.mxu0 %v263
  %727 = vmatprep.subr.mxu0 0.0
  %728 = vmatpush1.msra.mxu0 %v264
  %729 = vmatprep.subr.mxu0 0.0
  %730 = vmatpush1.msra.mxu0 %v265
  %731 = vmatprep.subr.mxu0 0.0
  %732 = vmatpush1.msra.mxu0 %v266
  %733 = vmatprep.subr.mxu0 0.0
  %734 = vmatpush1.msra.mxu0 %v267
  %735 = vmatprep.subr.mxu0 0.0
  %736 = vmatpush1.msra.mxu0 %v268
  %737 = vmatprep.subr.mxu0 0.0
  %738 = vmatpush1.msra.mxu0 %v269
  %739 = vmatprep.subr.mxu0 0.0
  %740 = vmatpush1.msra.mxu0 %v270
  %741 = vmatprep.subr.mxu0 0.0
  %742 = vmatpush1.msra.mxu0 %v271
  %743 = vmatprep.subr.mxu0 0.0
  %744 = vmatpush1.msra.mxu0 %v272
  %745 = vmatprep.subr.mxu0 0.0
  %746 = vmatpush1.msra.mxu0 %v273
  %747 = vmatprep.subr.mxu0 0.0
  %748 = vmatpush1.msra.mxu0 %v274
  %749 = vmatprep.subr.mxu0 0.0
  %750 = vmatpush1.msra.mxu0 %v275
  %751 = vmatprep.subr.mxu0 0.0
  %752 = vmatpush1.msra.mxu0 %v276
  %753 = vmatprep.subr.mxu0 0.0
  %754 = vmatpush1.msra.mxu0 %v277
  %755 = vmatprep.subr.mxu0 0.0
  %756 = vmatpush1.msra.mxu0 %v278
  %757 = vmatprep.subr.mxu0 0.0
  %758 = vmatpush1.msra.mxu0 0.0
  %759 = vmatprep.subr.mxu0 0.0
  %760 = vmatpush1.msra.mxu0 0.0
  %761 = vmatprep.subr.mxu0 0.0
  %762 = vmatpush1.msra.mxu0 0.0
  %763 = vmatprep.subr.mxu0 0.0
  %764 = vmatpush1.msra.mxu0 0.0
  %765 = vmatprep.subr.mxu0 0.0
  %766 = vmatpush1.msra.mxu0 0.0
  %767 = vmatprep.subr.mxu0 0.0
  %768 = vmatpush1.msra.mxu0 0.0
  %769 = vmatprep.subr.mxu0 0.0
  %770 = vmatpush1.msra.mxu0 0.0
  %771 = vmatprep.subr.mxu0 0.0
  %772 = vmatpush1.msra.mxu0 0.0
  %773 = vmatprep.subr.mxu0 0.0
  %774 = vmatpush1.msra.mxu0 0.0
  %775 = vmatprep.subr.mxu0 0.0
  %776 = vmatpush1.msra.mxu0 0.0
  %777 = vmatprep.subr.mxu0 0.0
  %778 = vmatpush1.msra.mxu0 0.0
  %779 = vmatprep.subr.mxu0 0.0
  %780 = vmatpush1.msra.mxu0 0.0
  %781 = vmatprep.subr.mxu0 0.0
  %782 = vmatpush1.msra.mxu0 0.0
  %783 = vmatprep.subr.mxu0 0.0
  %784 = vmatpush1.msra.mxu0 0.0
  %785 = vmatprep.subr.mxu0 0.0
  %786 = vmatpush1.msra.mxu0 0.0
  %787 = vmatprep.subr.mxu0 0.0
  %788 = vmatpush1.msra.mxu0 0.0
  %789 = vmatprep.mubr.f32.mxu0 0.0
  %790 = vmatmul.mubr.f32.gmra.mrb[0].mxu0 %v722
  %v791 = vpop.f32.mrb[0].mxu0
  %v792 = vadd.f32 0.0, %v791
  %v793 = vpop.f32.mrb[0].mxu0
  %794 = vdwg.mxu0
  %v795 = vadd.f32 %v724, %v792
  %v796 = vtanh.pop %v795
  %s797 = scalar_lea.vmem [#allocation3], 56
  %v798 = vld [vmem:[%s797] sm:$0xff]
  %799 = vmatprep.subr.mxu0 0.0
  %800 = vmatpush1.msra.mxu0 %v263
  %801 = vmatprep.subr.mxu0 0.0
  %802 = vmatpush1.msra.mxu0 %v264
  %803 = vmatprep.subr.mxu0 0.0
  %804 = vmatpush1.msra.mxu0 %v265
  %805 = vmatprep.subr.mxu0 0.0
  %806 = vmatpush1.msra.mxu0 %v266
  %807 = vmatprep.subr.mxu0 0.0
  %808 = vmatpush1.msra.mxu0 %v267
  %809 = vmatprep.subr.mxu0 0.0
  %810 = vmatpush1.msra.mxu0 %v268
  %811 = vmatprep.subr.mxu0 0.0
  %812 = vmatpush1.msra.mxu0 %v269
  %813 = vmatprep.subr.mxu0 0.0
  %814 = vmatpush1.msra.mxu0 %v270
  %815 = vmatprep.subr.mxu0 0.0
  %816 = vmatpush1.msra.mxu0 %v271
  %817 = vmatprep.subr.mxu0 0.0
  %818 = vmatpush1.msra.mxu0 %v272
  %819 = vmatprep.subr.mxu0 0.0
  %820 = vmatpush1.msra.mxu0 %v273
  %821 = vmatprep.subr.mxu0 0.0
  %822 = vmatpush1.msra.mxu0 %v274
  %823 = vmatprep.subr.mxu0 0.0
  %824 = vmatpush1.msra.mxu0 %v275
  %825 = vmatprep.subr.mxu0 0.0
  %826 = vmatpush1.msra.mxu0 %v276
  %827 = vmatprep.subr.mxu0 0.0
  %828 = vmatpush1.msra.mxu0 %v277
  %829 = vmatprep.subr.mxu0 0.0
  %830 = vmatpush1.msra.mxu0 %v278
  %831 = vmatprep.subr.mxu0 0.0
  %832 = vmatpush1.msra.mxu0 0.0
  %833 = vmatprep.subr.mxu0 0.0
  %834 = vmatpush1.msra.mxu0 0.0
  %835 = vmatprep.subr.mxu0 0.0
  %836 = vmatpush1.msra.mxu0 0.0
  %837 = vmatprep.subr.mxu0 0.0
  %838 = vmatpush1.msra.mxu0 0.0
  %839 = vmatprep.subr.mxu0 0.0
  %840 = vmatpush1.msra.mxu0 0.0
  %841 = vmatprep.subr.mxu0 0.0
  %842 = vmatpush1.msra.mxu0 0.0
  %843 = vmatprep.subr.mxu0 0.0
  %844 = vmatpush1.msra.mxu0 0.0
  %845 = vmatprep.subr.mxu0 0.0
  %846 = vmatpush1.msra.mxu0 0.0
  %847 = vmatprep.subr.mxu0 0.0
  %848 = vmatpush1.msra.mxu0 0.0
  %849 = vmatprep.subr.mxu0 0.0
  %850 = vmatpush1.msra.mxu0 0.0
  %851 = vmatprep.subr.mxu0 0.0
  %852 = vmatpush1.msra.mxu0 0.0
  %853 = vmatprep.subr.mxu0 0.0
  %854 = vmatpush1.msra.mxu0 0.0
  %855 = vmatprep.subr.mxu0 0.0
  %856 = vmatpush1.msra.mxu0 0.0
  %857 = vmatprep.subr.mxu0 0.0
  %858 = vmatpush1.msra.mxu0 0.0
  %859 = vmatprep.subr.mxu0 0.0
  %860 = vmatpush1.msra.mxu0 0.0
  %861 = vmatprep.subr.mxu0 0.0
  %862 = vmatpush1.msra.mxu0 0.0
  %863 = vmatprep.mubr.f32.mxu0 0.0
  %864 = vmatmul.mubr.f32.gmra.mrb[0].mxu0 %v796
  %v865 = vpop.f32.mrb[0].mxu0
  %v866 = vadd.f32 0.0, %v865
  %v867 = vpop.f32.mrb[0].mxu0
  %868 = vdwg.mxu0
  %v869 = vadd.f32 %v798, %v866
  %v870 = vtanh.pop %v869
  %871 = vst [vmem:[#allocation2] sm:$0xff] %v870
  // Predicated region
  $region60: #{doc_tower_forward.1} parent=0 // pred_check
    %p872 = pneg %p21
  $region61: #{doc_tower_forward.1} parent=0 // pred_check_branch
    %874 = sbr.rel (%p872) target = $region63
  $region62: #{doc_tower_forward.1} parent=0 // pred_region
    %s875 = smul.u32 128, 1
    %s876 = sshll.u32 %s875, 4
    %877 = dma.done [#allocation5], %s876
    %v878 = vld [vmem:[#allocation4] sm:$0xff]
    %v879 = vld [vmem:[#allocation4 + $0x8] sm:$0xff]
    %v880 = vld [vmem:[#allocation4 + $0x10] sm:$0xff]
    %v881 = vld [vmem:[#allocation4 + $0x18] sm:$0xff]
    %v882 = vld [vmem:[#allocation4 + $0x20] sm:$0xff]
    %v883 = vld [vmem:[#allocation4 + $0x28] sm:$0xff]
    %v884 = vld [vmem:[#allocation4 + $0x30] sm:$0xff]
    %v885 = vld [vmem:[#allocation4 + $0x38] sm:$0xff]
    %v886 = vld [vmem:[#allocation4 + $0x40] sm:$0xff]
    %v887 = vld [vmem:[#allocation4 + $0x48] sm:$0xff]
    %v888 = vld [vmem:[#allocation4 + $0x50] sm:$0xff]
    %v889 = vld [vmem:[#allocation4 + $0x58] sm:$0xff]
    %v890 = vld [vmem:[#allocation4 + $0x60] sm:$0xff]
    %v891 = vld [vmem:[#allocation4 + $0x68] sm:$0xff]
    %v892 = vld [vmem:[#allocation4 + $0x70] sm:$0xff]
    %v893 = vld [vmem:[#allocation4 + $0x78] sm:$0xff]
    %v894 = vld [vmem:[%s5] sm:$0x1]
    %v896 = vlaneseq
    %v897 = vshrl.u32 %v896, 7
    %v898 = vsub.s32 0, %v897
    %v899 = vrot.slane %v894, %v898
    %901 = vmatprep.subr.mxu0 0.0
    %902 = vmatpush1.msra.mxu0 %v878
    %903 = vmatprep.subr.mxu0 0.0
    %904 = vmatpush1.msra.mxu0 %v879
    %905 = vmatprep.subr.mxu0 0.0
    %906 = vmatpush1.msra.mxu0 %v880
    %907 = vmatprep.subr.mxu0 0.0
    %908 = vmatpush1.msra.mxu0 %v881
    %909 = vmatprep.subr.mxu0 0.0
    %910 = vmatpush1.msra.mxu0 %v882
    %911 = vmatprep.subr.mxu0 0.0
    %912 = vmatpush1.msra.mxu0 %v883
    %913 = vmatprep.subr.mxu0 0.0
    %914 = vmatpush1.msra.mxu0 %v884
    %915 = vmatprep.subr.mxu0 0.0
    %916 = vmatpush1.msra.mxu0 %v885
    %917 = vmatprep.subr.mxu0 0.0
    %918 = vmatpush1.msra.mxu0 %v886
    %919 = vmatprep.subr.mxu0 0.0
    %920 = vmatpush1.msra.mxu0 %v887
    %921 = vmatprep.subr.mxu0 0.0
    %922 = vmatpush1.msra.mxu0 %v888
    %923 = vmatprep.subr.mxu0 0.0
    %924 = vmatpush1.msra.mxu0 %v889
    %925 = vmatprep.subr.mxu0 0.0
    %926 = vmatpush1.msra.mxu0 %v890
    %927 = vmatprep.subr.mxu0 0.0
    %928 = vmatpush1.msra.mxu0 %v891
    %929 = vmatprep.subr.mxu0 0.0
    %930 = vmatpush1.msra.mxu0 %v892
    %931 = vmatprep.subr.mxu0 0.0
    %932 = vmatpush1.msra.mxu0 %v893
    %933 = vmatprep.subr.mxu0 0.0
    %934 = vmatpush1.msra.mxu0 0.0
    %935 = vmatprep.subr.mxu0 0.0
    %936 = vmatpush1.msra.mxu0 0.0
    %937 = vmatprep.subr.mxu0 0.0
    %938 = vmatpush1.msra.mxu0 0.0
    %939 = vmatprep.subr.mxu0 0.0
    %940 = vmatpush1.msra.mxu0 0.0
    %941 = vmatprep.subr.mxu0 0.0
    %942 = vmatpush1.msra.mxu0 0.0
    %943 = vmatprep.subr.mxu0 0.0
    %944 = vmatpush1.msra.mxu0 0.0
    %945 = vmatprep.subr.mxu0 0.0
    %946 = vmatpush1.msra.mxu0 0.0
    %947 = vmatprep.subr.mxu0 0.0
    %948 = vmatpush1.msra.mxu0 0.0
    %949 = vmatprep.subr.mxu0 0.0
    %950 = vmatpush1.msra.mxu0 0.0
    %951 = vmatprep.subr.mxu0 0.0
    %952 = vmatpush1.msra.mxu0 0.0
    %953 = vmatprep.subr.mxu0 0.0
    %954 = vmatpush1.msra.mxu0 0.0
    %955 = vmatprep.subr.mxu0 0.0
    %956 = vmatpush1.msra.mxu0 0.0
    %957 = vmatprep.subr.mxu0 0.0
    %958 = vmatpush1.msra.mxu0 0.0
    %959 = vmatprep.subr.mxu0 0.0
    %960 = vmatpush1.msra.mxu0 0.0
    %961 = vmatprep.subr.mxu0 0.0
    %962 = vmatpush1.msra.mxu0 0.0
    %963 = vmatprep.subr.mxu0 0.0
    %964 = vmatpush1.msra.mxu0 0.0
    %965 = vmatprep.mubr.f32.mxu0 0.0
    %966 = vmatmul.mubr.f32.gmra.mrb[0].mxu0 %v870
    %v967 = vpop.f32.mrb[0].mxu0
    %v968 = vadd.f32 %v899, %v967
    %v969 = vpop.f32.mrb[0].mxu0
    %970 = vdwg.mxu0
    %971 = vst [vmem:[%s6] sm:$0xff] %v968
  $region63: #{doc_tower_forward.1} parent=0 // pred_fallthru
    _
  // Predicated region
  $region64: #{doc_tower_forward.1} parent=0 // pred_check
    _
  $region65: #{doc_tower_forward.1} parent=0 // pred_check_branch
    %973 = sbr.rel (0) target = $region67
  $region66: #{doc_tower_forward.1} parent=0 // pred_region
    _
  $region67: #{doc_tower_forward.1} parent=0 // pred_fallthru
    _
  // Predicated region
  $region68: #{doc_tower_forward.1} parent=0 // pred_check
    _
  $region69: #{doc_tower_forward.1} parent=0 // pred_check_branch
    %975 = sbr.rel (0) target = $region71
  $region70: #{doc_tower_forward.1} parent=0 // pred_region
    _
  $region71: #{doc_tower_forward.1} parent=0 // pred_fallthru
    _
  %976 = vsyncmov [#allocation5]
  %s977 = vpop.sfrf %976
  %p978 = scmp.eq.s32.totalorder %s977, 0
  %p979 = pneg %p978
  %981 = shalt.err (%p979)

</llo_original>
